<compile_context>
chip_gen: v5e
topology: v5e:2x2
jax: 0.10.0
libtpu: 0.0.40
codegen_flags: <defaults>
</compile_context>

<pallas_src>
import functools
import math

import jax
import jax.numpy as jnp
import numpy as np
from jax import lax
from jax.experimental import pallas as pl
from jax.experimental.pallas import tpu as pltpu


# --------------------------------------------------------------------------- #
# helpers                                                                      #
# --------------------------------------------------------------------------- #

def _vmem_capacity_bytes():
    """Physical VMEM of the local chip; conservative default if the query fails."""
    try:
        return int(pltpu.get_tpu_info().vmem_capacity_bytes)
    except Exception:
        return 64 << 20          # v7x has the smallest per-core VMEM


def _vmem_limit(need_bytes):
    cap = _vmem_capacity_bytes()
    return int(min(max(need_bytes, 16 << 20), cap - (8 << 20)))


def _default_mxu_dtype(input_dtype):
    """bf16 MXU operands on v6e/v7x (several x the f32 path); softmax stays f32."""
    if input_dtype == jnp.bfloat16:
        return jnp.bfloat16
    try:
        kind = jax.devices()[0].device_kind.lower()
    except Exception:
        kind = ""
    if ("v6" in kind) or ("v7" in kind):
        return jnp.bfloat16
    return input_dtype


def _pick_row_tile(total, target):
    """Largest multiple-of-8 divisor of `total` <= target (else the full dim)."""
    if total <= target:
        return total
    for c in range(target, 7, -1):
        if total % c == 0 and c % 8 == 0:
            return c
    return total


def _pick_kv_tile(total, target):
    """Largest multiple-of-128 divisor of `total` <= target (else the full dim).

    The kv tile is the lane dim of the additive-mask block, so it must be a
    multiple of 128 (or the full sequence length) for a legal BlockSpec.
    """
    if total <= target:
        return total
    for c in range(target, 127, -1):
        if total % c == 0 and c % 128 == 0:
            return c
    return total


def _pick_head_group(num_heads, head_dim):
    """Smallest head-group whose q/k/v/output slab (group*D lanes) is 128-aligned."""
    for g in range(1, num_heads + 1):
        if num_heads % g == 0 and (g * head_dim) % 128 == 0:
            return g
    return num_heads             # small-H fallback: one full-width (H-lane) slab


# --------------------------------------------------------------------------- #
# kernel 1: fused QKV projection  x[B,T,H] @ [Wq;Wk;Wv].T + b -> qkv[B,T,3H]   #
# --------------------------------------------------------------------------- #

def _qkv_proj_kernel(x_ref, w_ref, b_ref, qkv_ref):
    # x_ref: (1, Tt, H); w_ref: (3H, H) rows = [Wq/sqrt(D); Wk; Wv] (nn.Linear layout)
    # b_ref: (1, 3H) f32; qkv_ref: (1, Tt, 3H) stored in the MXU operand dtype
    x = x_ref[0].astype(w_ref.dtype)
    # x @ W.T without materializing the transpose; f32 accumulation on the MXU.
    y = lax.dot_general(x, w_ref[...], (((1,), (1,)), ((), ())),
                        preferred_element_type=jnp.float32)           # (Tt, 3H)
    y = y + b_ref[...]                                                 # f32 bias, bcast
    qkv_ref[0] = y.astype(qkv_ref.dtype)


def _qkv_projection(x, w_qkv, b_qkv, qkv_dtype, *, t_tile):
    B, T, H = x.shape
    H3 = w_qkv.shape[0]
    Tt = _pick_row_tile(T, t_tile)

    isz_x = x.dtype.itemsize
    isz_w = np.dtype(w_qkv.dtype).itemsize
    isz_o = np.dtype(qkv_dtype).itemsize
    need = (2 * Tt * H * isz_x          # x tile (double-buffered)
            + 2 * H3 * H * isz_w        # fused weights (budget 2 for the fallback)
            + 2 * H3 * 4                # fused bias
            + 2 * Tt * H3 * isz_o       # qkv tile (double-buffered)
            + Tt * H3 * 4               # f32 matmul result
            + (4 << 20))

    def build(single_buffer_consts):
        # Constant-index weight/bias blocks are only fetched once; single-buffer them
        # so they don't eat 2x VMEM (material on v7x).
        mode = {"pipeline_mode": pl.Buffered(1)} if single_buffer_consts else {}
        return pl.pallas_call(
            _qkv_proj_kernel,
            out_shape=jax.ShapeDtypeStruct((B, T, H3), qkv_dtype),
            grid_spec=pltpu.PrefetchScalarGridSpec(
                num_scalar_prefetch=0,
                grid=(B, T // Tt),
                in_specs=[
                    pl.BlockSpec((1, Tt, H), lambda b, t: (b, t, 0)),
                    pl.BlockSpec((H3, H), lambda b, t: (0, 0), **mode),
                    pl.BlockSpec((1, H3), lambda b, t: (0, 0), **mode),
                ],
                out_specs=pl.BlockSpec((1, Tt, H3), lambda b, t: (b, t, 0)),
            ),
            compiler_params=pltpu.CompilerParams(
                dimension_semantics=("parallel", "parallel"),
                vmem_limit_bytes=_vmem_limit(need)),
        )

    try:
        return build(True)(x, w_qkv, b_qkv)
    except Exception:
        # Some jax versions reject single-buffered pipeline_mode; fall back.
        return build(False)(x, w_qkv, b_qkv)


# --------------------------------------------------------------------------- #
# kernel 2: flash-style attention over qkv[B,T,3H]                             #
# --------------------------------------------------------------------------- #

def _flash_attn_kernel(q_ref, k_ref, v_ref, mask_ref, o_ref,
                       m_sc, l_sc, acc_sc, *,
                       head_dim, heads_per_group, q_off, k_off, v_off):
    ki = pl.program_id(3)

    @pl.when(ki == 0)
    def _init():
        m_sc[...] = jnp.full_like(m_sc, -jnp.inf)
        l_sc[...] = jnp.zeros_like(l_sc)
        acc_sc[...] = jnp.zeros_like(acc_sc)

    mask = mask_ref[0].astype(jnp.float32)           # (1, Tk) additive, bcast over rows
    q_slab = q_ref[0]                                # (Tq, W)  q pre-scaled by 1/sqrt(D)
    k_slab = k_ref[0]                                # (Tk, W)
    v_slab = v_ref[0]                                # (Tk, W)
    D = head_dim

    # Small static unroll: the head group is sized so the slab is one 128-lane tile
    # (head pairs for D=64), which bounds the live [Tq, Tk] buffers per step.
    for j in range(heads_per_group):
        q = q_slab[:, q_off + j * D:q_off + (j + 1) * D]             # (Tq, D)
        k = k_slab[:, k_off + j * D:k_off + (j + 1) * D]             # (Tk, D)
        v = v_slab[:, v_off + j * D:v_off + (j + 1) * D]             # (Tk, D)

        # scores = q @ k.T via dot_general (contract last dims, no .T relayout)
        s = lax.dot_general(q, k, (((1,), (1,)), ((), ())),
                            preferred_element_type=jnp.float32)      # (Tq, Tk)
        s = s + mask

        # online (flash) softmax update, kept in f32 on the VPU/EUP
        m_prev = m_sc[j]
        m_new = jnp.maximum(m_prev, jnp.max(s, axis=-1, keepdims=True))
        alpha = jnp.exp(m_prev - m_new)
        p = jnp.exp(s - m_new)
        l_sc[j] = alpha * l_sc[j] + jnp.sum(p, axis=-1, keepdims=True)
        acc_sc[j] = alpha * acc_sc[j] + jnp.dot(
            p.astype(v_slab.dtype), v, preferred_element_type=jnp.float32)
        m_sc[j] = m_new

    # TODO(synk): attention-probs dropout is identity in eval/inference mode.

    @pl.when(ki == pl.num_programs(3) - 1)
    def _finalize():
        for j in range(heads_per_group):
            # exact reciprocal: O(Tq) work, keeps the f32 path tight vs. the reference
            inv = pl.reciprocal(l_sc[j], approx=False)
            o_ref[0, :, j * D:(j + 1) * D] = (acc_sc[j] * inv).astype(o_ref.dtype)


def _flash_attention(qkv, mask, out_dtype, *, num_heads, head_dim, hidden,
                     q_tile, kv_tile):
    B, T, H3 = qkv.shape
    H, D = hidden, head_dim
    Tq = _pick_row_tile(T, q_tile)
    Tk = _pick_kv_tile(T, kv_tile)
    G = _pick_head_group(num_heads, D)
    n_hg = num_heads // G
    slab = G * D

    if slab % 128 == 0:
        # q/k/v column stripes of width G*D (>=128 lanes) selected by the index_map.
        W = slab
        q_spec = pl.BlockSpec((1, Tq, W), lambda b, qi, g, ki: (b, qi, g))
        k_spec = pl.BlockSpec((1, Tk, W), lambda b, qi, g, ki: (b, ki, n_hg + g))
        v_spec = pl.BlockSpec((1, Tk, W), lambda b, qi, g, ki: (b, ki, 2 * n_hg + g))
        offs = (0, 0, 0)
    else:
        # Small-H fallback (slab not 128-aligned): take the full (.., 3H) row block
        # and slice q/k/v statically in-kernel.  Only hit for tiny hidden sizes.
        W = H3
        q_spec = pl.BlockSpec((1, Tq, W), lambda b, qi, g, ki: (b, qi, 0))
        k_spec = pl.BlockSpec((1, Tk, W), lambda b, qi, g, ki: (b, ki, 0))
        v_spec = pl.BlockSpec((1, Tk, W), lambda b, qi, g, ki: (b, ki, 0))
        offs = (0, H, 2 * H)

    kernel = functools.partial(
        _flash_attn_kernel, head_dim=D, heads_per_group=G,
        q_off=offs[0], k_off=offs[1], v_off=offs[2])

    isz = qkv.dtype.itemsize
    osz = np.dtype(out_dtype).itemsize
    need = (2 * Tq * W * isz              # q slab (double-buffered)
            + 4 * Tk * W * isz            # k + v slabs (double-buffered)
            + 2 * Tk * 4                  # additive mask
            + 2 * Tq * slab * osz         # output slab
            + G * (Tq * 8 + Tq * D * 4)   # online-softmax state (m, l, acc)
            + 6 * Tq * Tk * 4             # live f32 score/exp intermediates
            + (4 << 20))

    return pl.pallas_call(
        kernel,
        out_shape=jax.ShapeDtypeStruct((B, T, H), out_dtype),
        grid_spec=pltpu.PrefetchScalarGridSpec(
            num_scalar_prefetch=0,
            grid=(B, T // Tq, n_hg, T // Tk),
            in_specs=[q_spec, k_spec, v_spec,
                      pl.BlockSpec((1, 1, Tk), lambda b, qi, g, ki: (b, 0, ki))],
            out_specs=pl.BlockSpec((1, Tq, slab), lambda b, qi, g, ki: (b, qi, g)),
            scratch_shapes=[
                pltpu.VMEM((G, Tq, 1), jnp.float32),    # running row max
                pltpu.VMEM((G, Tq, 1), jnp.float32),    # running denominator
                pltpu.VMEM((G, Tq, D), jnp.float32),    # running context accumulator
            ],
        ),
        compiler_params=pltpu.CompilerParams(
            # Output block is revisited only across the kv axis -> only it is
            # "arbitrary"; batch / q-tile / head-group shard across TensorCores.
            dimension_semantics=("parallel", "parallel", "parallel", "arbitrary"),
            vmem_limit_bytes=_vmem_limit(need)),
    )(qkv, qkv, qkv, mask)


# --------------------------------------------------------------------------- #
# public wrapper                                                               #
# --------------------------------------------------------------------------- #

def causal_self_attention(hidden_states, attention_mask, params, num_heads,
                          *, mxu_dtype=None, t_tile=256, q_tile=256, kv_tile=256):
    """hidden_states: [B, T, H]; attention_mask: [B, 1, 1, T] -> [B, T, H]."""
    B, T, H = hidden_states.shape
    assert H % num_heads == 0
    D = H // num_heads
    if mxu_dtype is None:
        mxu_dtype = _default_mxu_dtype(hidden_states.dtype)

    # Fuse Q/K/V weights + biases host-side (one operand, one MXU pass with N = 3H)
    # and fold the 1/sqrt(D) softmax scale into Wq/bq (constant fold -> removes the
    # per-score [T, T] VPU multiply).
    scale = 1.0 / math.sqrt(D)
    w_qkv = jnp.concatenate(
        [params["wq"].astype(jnp.float32) * scale,
         params["wk"].astype(jnp.float32),
         params["wv"].astype(jnp.float32)], axis=0).astype(mxu_dtype)      # [3H, H]
    b_qkv = jnp.concatenate(
        [params["bq"].astype(jnp.float32) * scale,
         params["bk"].astype(jnp.float32),
         params["bv"].astype(jnp.float32)]).reshape(1, 3 * H)              # f32 [1, 3H]

    qkv = _qkv_projection(hidden_states, w_qkv, b_qkv, mxu_dtype, t_tile=t_tile)

    mask = attention_mask.reshape(B, 1, T).astype(jnp.float32)
    return _flash_attention(qkv, mask, hidden_states.dtype,
                            num_heads=num_heads, head_dim=D, hidden=H,
                            q_tile=q_tile, kv_tile=kv_tile)


# --------------------------------------------------------------------------- #
# reference + self-test                                                        #
# --------------------------------------------------------------------------- #

def _reference(hidden_states, attention_mask, params, num_heads):
    B, T, H = hidden_states.shape
    D = H // num_heads

    def proj(w, b):
        y = hidden_states @ w.T + b
        return jnp.transpose(y.reshape(B, T, num_heads, D), (0, 2, 1, 3))

    q = proj(params["wq"], params["bq"])
    k = proj(params["wk"], params["bk"])
    v = proj(params["wv"], params["bv"])
    s = jnp.einsum("bhtd,bhsd->bhts", q, k) / jnp.sqrt(jnp.float32(D))
    s = s + attention_mask                     # [B,1,1,T] broadcasts
    p = jax.nn.softmax(s, axis=-1)
    ctx = jnp.einsum("bhts,bhsd->bhtd", p, v)
    return jnp.transpose(ctx, (0, 2, 1, 3)).reshape(B, T, H)


def _make_inputs(B, T, H, key):
    ks = jax.random.split(key, 7)
    bound = 1.0 / np.sqrt(H)
    params = {
        "wq": jax.random.uniform(ks[0], (H, H), jnp.float32, -bound, bound),
        "bq": jax.random.uniform(ks[1], (H,), jnp.float32, -bound, bound),
        "wk": jax.random.uniform(ks[2], (H, H), jnp.float32, -bound, bound),
        "bk": jax.random.uniform(ks[3], (H,), jnp.float32, -bound, bound),
        "wv": jax.random.uniform(ks[4], (H, H), jnp.float32, -bound, bound),
        "bv": jax.random.uniform(ks[5], (H,), jnp.float32, -bound, bound),
    }
    x = jax.random.normal(ks[6], (B, T, H), jnp.float32)
    # additive mask: 0 for attend, -10000 for masked-out trailing positions
    valid = (jnp.arange(T) < T - max(1, T // 4)).astype(jnp.float32)
    mask = jnp.broadcast_to(((1.0 - valid) * -10000.0).reshape(1, 1, 1, T),
                            (B, 1, 1, T))
    return x, mask, params


if __name__ == "__main__":
    # Small shapes consistent with the module (exercises the full-block fallback
    # layout path); checked tightly with f32 MXU operands + exact softmax division.
    B, T, H, NH = 2, 8, 32, 4
    x, mask, params = _make_inputs(B, T, H, jax.random.PRNGKey(0))
    out = jax.block_until_ready(
        causal_self_attention(x, mask, params, NH, mxu_dtype=jnp.float32))
    np.testing.assert_allclose(np.asarray(out),
                               np.asarray(_reference(x, mask, params, NH)),
                               rtol=2e-3, atol=2e-3)

    # Moderate shapes (several (8,128) tiles): exercises the tiled flash path,
    # 128-lane head pairs (D = 64), multi-tile online softmax, and both the
    # strict-f32 and the chip-default (bf16 on v6e/v7x) MXU operand paths.
    B, T, H, NH = 2, 512, 1024, 16
    x, mask, params = _make_inputs(B, T, H, jax.random.PRNGKey(0))
    ref = _reference(x, mask, params, NH)
    out_f32 = jax.block_until_ready(
        causal_self_attention(x, mask, params, NH, mxu_dtype=jnp.float32))
    np.testing.assert_allclose(np.asarray(out_f32), np.asarray(ref),
                               rtol=2e-3, atol=2e-3)
    out_fast = jax.block_until_ready(
        causal_self_attention(x, mask, params, NH))
    np.testing.assert_allclose(np.asarray(out_fast), np.asarray(ref),
                               rtol=5e-2, atol=5e-2)

    print("KERNEL_OK")
</pallas_src>

<mosaic_0001>
module attributes {stable_mosaic.version = 11 : i64} {
  func.func @_qkv_proj_kernel(%arg0: i32, %arg1: i32, %arg2: memref<1x8x32xf32, #tpu.memory_space<vmem>>, %arg3: memref<96x32xf32, #tpu.memory_space<vmem>>, %arg4: memref<1x96xf32, #tpu.memory_space<vmem>>, %arg5: memref<1x8x96xf32, #tpu.memory_space<vmem>>) attributes {dimension_semantics = [#tpu.dimension_semantics<parallel>, #tpu.dimension_semantics<parallel>], iteration_bounds = array<i64: 2, 1>, scalar_prefetch = 0 : i64, scratch_operands = 0 : i64, tpu.core_type = #tpu.core_type<tc>, window_params = [{transform_indices = @transform_0, window_bounds = array<i64: 1, 8, 32>}, {pipeline_mode = #tpu.pipeline_mode<synchronous>, transform_indices = @transform_1, window_bounds = array<i64: 96, 32>}, {pipeline_mode = #tpu.pipeline_mode<synchronous>, transform_indices = @transform_2, window_bounds = array<i64: 1, 96>}, {transform_indices = @transform_3, window_bounds = array<i64: 1, 8, 96>}]} {
    %c0 = arith.constant 0 : index
    %c0_0 = arith.constant 0 : index
    %c0_1 = arith.constant 0 : index
    %0 = vector.load %arg2[%c0, %c0_0, %c0_1] : memref<1x8x32xf32, #tpu.memory_space<vmem>>, vector<1x8x32xf32>
    %1 = vector.shape_cast %0 : vector<1x8x32xf32> to vector<8x32xf32>
    %c0_2 = arith.constant 0 : index
    %c0_3 = arith.constant 0 : index
    %2 = vector.load %arg3[%c0_2, %c0_3] : memref<96x32xf32, #tpu.memory_space<vmem>>, vector<96x32xf32>
    %cst = arith.constant dense<0.000000e+00> : vector<8x96xf32>
    %3 = tpu.matmul %1, %2, %cst {dimension_numbers = #tpu.dot_dimension_numbers<[1], [1], [0], [0], [0, 0, 1, 0], [], []>} : vector<8x32xf32>, vector<96x32xf32>, vector<8x96xf32> -> vector<8x96xf32>
    %c0_4 = arith.constant 0 : index
    %c0_5 = arith.constant 0 : index
    %4 = vector.load %arg4[%c0_4, %c0_5] : memref<1x96xf32, #tpu.memory_space<vmem>>, vector<1x96xf32>
    %5 = vector.broadcast %4 : vector<1x96xf32> to vector<8x96xf32>
    %6 = arith.addf %3, %5 : vector<8x96xf32>
    %c0_6 = arith.constant 0 : index
    %c0_7 = arith.constant 0 : index
    %c0_8 = arith.constant 0 : index
    %7 = vector.load %arg5[%c0_6, %c0_7, %c0_8] : memref<1x8x96xf32, #tpu.memory_space<vmem>>, vector<1x8x96xf32>
    %8 = vector.shape_cast %7 : vector<1x8x96xf32> to vector<8x96xf32>
    %9 = vector.shape_cast %6 : vector<8x96xf32> to vector<1x8x96xf32>
    tpu.vector_store %arg5[%c0_6, %c0_7, %c0_8], %9 {strides = array<i32>} : memref<1x8x96xf32, #tpu.memory_space<vmem>>, vector<1x8x96xf32>,
    return
  }
  func.func @transform_0(%arg0: i32, %arg1: i32) -> (i32, i32, i32) {
    %c0_i32 = arith.constant 0 : i32
    %c0_i32_0 = arith.constant 0 : i32
    return %arg0, %arg1, %c0_i32 : i32, i32, i32
  }
  func.func @transform_1(%arg0: i32, %arg1: i32) -> (i32, i32) {
    %c0_i32 = arith.constant 0 : i32
    %c0_i32_0 = arith.constant 0 : i32
    %c0_i32_1 = arith.constant 0 : i32
    return %c0_i32, %c0_i32_0 : i32, i32
  }
  func.func @transform_2(%arg0: i32, %arg1: i32) -> (i32, i32) {
    %c0_i32 = arith.constant 0 : i32
    %c0_i32_0 = arith.constant 0 : i32
    %c0_i32_1 = arith.constant 0 : i32
    return %c0_i32, %c0_i32_0 : i32, i32
  }
  func.func @transform_3(%arg0: i32, %arg1: i32) -> (i32, i32, i32) {
    %c0_i32 = arith.constant 0 : i32
    %c0_i32_0 = arith.constant 0 : i32
    return %arg0, %arg1, %c0_i32 : i32, i32, i32
  }
}

module attributes {stable_mosaic.version = 11 : i64} {
  func.func @_qkv_proj_kernel(%arg0: i32, %arg1: i32, %arg2: memref<1x8x32xf32, #tpu.memory_space<vmem>>, %arg3: memref<96x32xf32, #tpu.memory_space<vmem>>, %arg4: memref<1x96xf32, #tpu.memory_space<vmem>>, %arg5: memref<1x8x96xf32, #tpu.memory_space<vmem>>) attributes {dimension_semantics = [#tpu.dimension_semantics<parallel>, #tpu.dimension_semantics<parallel>], iteration_bounds = array<i64: 2, 1>, scalar_prefetch = 0 : i64, scratch_operands = 0 : i64, tpu.core_type = #tpu.core_type<tc>, window_params = [{transform_indices = @transform_0, window_bounds = array<i64: 1, 8, 32>}, {pipeline_mode = #tpu.pipeline_mode<synchronous>, transform_indices = @transform_1, window_bounds = array<i64: 96, 32>}, {pipeline_mode = #tpu.pipeline_mode<synchronous>, transform_indices = @transform_2, window_bounds = array<i64: 1, 96>}, {transform_indices = @transform_3, window_bounds = array<i64: 1, 8, 96>}]} {
    %c0 = arith.constant 0 : index
    %c0_0 = arith.constant 0 : index
    %c0_1 = arith.constant 0 : index
    %0 = vector.load %arg2[%c0, %c0_0, %c0_1] : memref<1x8x32xf32, #tpu.memory_space<vmem>>, vector<1x8x32xf32>
    %1 = vector.shape_cast %0 : vector<1x8x32xf32> to vector<8x32xf32>
    %c0_2 = arith.constant 0 : index
    %c0_3 = arith.constant 0 : index
    %2 = vector.load %arg3[%c0_2, %c0_3] : memref<96x32xf32, #tpu.memory_space<vmem>>, vector<96x32xf32>
    %cst = arith.constant dense<0.000000e+00> : vector<8x96xf32>
    %3 = tpu.matmul %1, %2, %cst {dimension_numbers = #tpu.dot_dimension_numbers<[1], [1], [0], [0], [0, 0, 1, 0], [], []>} : vector<8x32xf32>, vector<96x32xf32>, vector<8x96xf32> -> vector<8x96xf32>
    %c0_4 = arith.constant 0 : index
    %c0_5 = arith.constant 0 : index
    %4 = vector.load %arg4[%c0_4, %c0_5] : memref<1x96xf32, #tpu.memory_space<vmem>>, vector<1x96xf32>
    %5 = vector.broadcast %4 : vector<1x96xf32> to vector<8x96xf32>
    %6 = arith.addf %3, %5 : vector<8x96xf32>
    %c0_6 = arith.constant 0 : index
    %c0_7 = arith.constant 0 : index
    %c0_8 = arith.constant 0 : index
    %7 = vector.load %arg5[%c0_6, %c0_7, %c0_8] : memref<1x8x96xf32, #tpu.memory_space<vmem>>, vector<1x8x96xf32>
    %8 = vector.shape_cast %7 : vector<1x8x96xf32> to vector<8x96xf32>
    %9 = vector.shape_cast %6 : vector<8x96xf32> to vector<1x8x96xf32>
    tpu.vector_store %arg5[%c0_6, %c0_7, %c0_8], %9 {strides = array<i32>} : memref<1x8x96xf32, #tpu.memory_space<vmem>>, vector<1x8x96xf32>,
    return
  }
  func.func @transform_0(%arg0: i32, %arg1: i32) -> (i32, i32, i32) {
    %c0_i32 = arith.constant 0 : i32
    %c0_i32_0 = arith.constant 0 : i32
    return %arg0, %arg1, %c0_i32 : i32, i32, i32
  }
  func.func @transform_1(%arg0: i32, %arg1: i32) -> (i32, i32) {
    %c0_i32 = arith.constant 0 : i32
    %c0_i32_0 = arith.constant 0 : i32
    %c0_i32_1 = arith.constant 0 : i32
    return %c0_i32, %c0_i32_0 : i32, i32
  }
  func.func @transform_2(%arg0: i32, %arg1: i32) -> (i32, i32) {
    %c0_i32 = arith.constant 0 : i32
    %c0_i32_0 = arith.constant 0 : i32
    %c0_i32_1 = arith.constant 0 : i32
    return %c0_i32, %c0_i32_0 : i32, i32
  }
  func.func @transform_3(%arg0: i32, %arg1: i32) -> (i32, i32, i32) {
    %c0_i32 = arith.constant 0 : i32
    %c0_i32_0 = arith.constant 0 : i32
    return %arg0, %arg1, %c0_i32 : i32, i32, i32
  }
}

</mosaic_0001>

<llo_original>
// kernel: tpu_custom_call.1
$region0: #{tpu_custom_call.1}
  #allocation0 [shape = 'u32[]', space=smem, size = 0x4, offset = 0x4, fixed_abs, tag = 'smem constant byte address 0x4 - core index']
  #allocation1 [shape = 'u32[72,128]{1,0:T(1,128)}', space=vmem, size = 0x9000, scoped, tag = 'internal scratch']
  %s0 = inlined_call_operand.vmem [shape: f32[2,8,32], index: 0, kind: input, shape index: {}]
  %s1 = inlined_call_operand.vmem [shape: f32[96,32], index: 1, kind: input, shape index: {}]
  %s2 = inlined_call_operand.vmem [shape: f32[1,96], index: 2, kind: input, shape index: {}]
  %s3 = inlined_call_operand.hbm [shape: f32[2,8,96], index: 3, kind: output, shape index: {}]
  %s4 = sld [smem:[#allocation0]]
  $region45: #{tpu_custom_call.1} parent=0
    _
  %s6 = ssub.s32 1, %s4
  %s7 = scalar_select 0, %s6, %s4
  $region1: #{tpu_custom_call.1} parent=0
    #allocation2 [shape = 'u8[8192]{0}', space=vmem, size = 0x2000, scoped, tag = 'output window, operand 0']
    #allocation3 [shape = 's32[2]{0}', space=sflag, size = 0x8, scoped, tag = 'scoped memory for tpu_custom_call.1']
    %8 = vsyncpa [#allocation3], 0
    %s9 = scalar_lea.sflag [#allocation3], 1
    %10 = vsyncpa %s9, 0
    loop: start=0, step=1, limit=4
    $region2: #{tpu_custom_call.1} parent=1 // loop_pre_header
      _
    $region3: #{tpu_custom_call.1} parent=1 // loop_header
      %s12 = sphi 0, %s16
      %p13 = scmp.ge.s32.totalorder %s12, 4
      %s19 = sphi 0, %s31
      %s20 = sphi 0, %s27
      %s21 = sphi 0, %s19
      %s22 = sphi 0, %s20
      %s23 = sphi 0, %s21
      %s24 = sphi 0, %s22
      %s36 = sphi 0, %s38
      %s39 = sphi 0, %s36
      %s40 = sphi 0, %s39
      %s56 = sphi 0, %s40
      %s60 = sphi 0, %s60
      %s62 = sphi 0, %s60
      %s63 = sphi 0, %s62
      %s77 = sphi 0, %s63
      %s81 = sphi 0, %s81
      %s83 = sphi 0, %s81
      %s84 = sphi 0, %s83
      %s98 = sphi 0, %s84
      %s106 = sphi 0, %s108
      %s109 = sphi 0, %s106
      %s110 = sphi 0, %s109
      %s126 = sphi 0, %s110
    $region4: #{tpu_custom_call.1} parent=1 // loop_header_branch
      %15 = sbr.rel (%p13) target = $region8
    $region5: #{tpu_custom_call.1} parent=1 // loop_body
      %s17 = ssub.s32 %s12, 1
      %s18 = ssub.s32 %s12, 2
      %s25 = sadd.s32 1, %s20
      %p26 = scmp.ge.s32.totalorder %s25, 1
      %s27 = scalar_select %p26, 0, %s25
      %s28 = sadd.s32 1, %s19
      %s29 = scalar_select %p26, %s28, %s19
      %p30 = scmp.ge.s32.totalorder %s29, 2
      %s31 = scalar_select %p30, 0, %s29
      %s32 = ssub.s32 %s19, %s31
      %s33 = ssub.s32 %s20, %s27
      %s34 = sor.u32 %s32, %s33
      %p35 = scmp.eq.s32.totalorder %s34, 0
      %s37 = sadd.s32 %s36, 1
      %s38 = scalar_select %p35, %s36, %s37
      %p41 = pneg %p35
      %p42 = scmp.eq.s32.totalorder %s12, 1
      %p43 = por %p41, %p42
      %p44 = scmp.ne.s32.totalorder %s36, %s39
      %p45 = scmp.eq.s32.totalorder %s12, 0
      %p46 = por %p44, %p45
      %p47 = scmp.ne.s32.totalorder %s36, %s39
      %p48 = scmp.eq.s32.totalorder %s17, 1
      %p49 = por %p47, %p48
      %p50 = scmp.ne.s32.totalorder %s39, %s40
      %p51 = scmp.eq.s32.totalorder %s17, 0
      %p52 = por %p50, %p51
      %p53 = scmp.ne.s32.totalorder %s39, %s40
      %p54 = scmp.eq.s32.totalorder %s18, 1
      %p55 = por %p53, %p54
      %p57 = scmp.ne.s32.totalorder %s40, %s56
      %p58 = scmp.eq.s32.totalorder %s18, 0
      %p59 = por %p57, %p58
      %s61 = sadd.s32 %s60, 1
      %p64 = scmp.eq.s32.totalorder %s12, 1
      %p65 = scmp.ne.s32.totalorder %s60, %s62
      %p66 = scmp.eq.s32.totalorder %s12, 0
      %p67 = por %p65, %p66
      %p68 = scmp.ne.s32.totalorder %s60, %s62
      %p69 = scmp.eq.s32.totalorder %s17, 1
      %p70 = por %p68, %p69
      %p71 = scmp.ne.s32.totalorder %s62, %s63
      %p72 = scmp.eq.s32.totalorder %s17, 0
      %p73 = por %p71, %p72
      %p74 = scmp.ne.s32.totalorder %s62, %s63
      %p75 = scmp.eq.s32.totalorder %s18, 1
      %p76 = por %p74, %p75
      %p78 = scmp.ne.s32.totalorder %s63, %s77
      %p79 = scmp.eq.s32.totalorder %s18, 0
      %p80 = por %p78, %p79
      %s82 = sadd.s32 %s81, 1
      %p85 = scmp.eq.s32.totalorder %s12, 1
      %p86 = scmp.ne.s32.totalorder %s81, %s83
      %p87 = scmp.eq.s32.totalorder %s12, 0
      %p88 = por %p86, %p87
      %p89 = scmp.ne.s32.totalorder %s81, %s83
      %p90 = scmp.eq.s32.totalorder %s17, 1
      %p91 = por %p89, %p90
      %p92 = scmp.ne.s32.totalorder %s83, %s84
      %p93 = scmp.eq.s32.totalorder %s17, 0
      %p94 = por %p92, %p93
      %p95 = scmp.ne.s32.totalorder %s83, %s84
      %p96 = scmp.eq.s32.totalorder %s18, 1
      %p97 = por %p95, %p96
      %p99 = scmp.ne.s32.totalorder %s84, %s98
      %p100 = scmp.eq.s32.totalorder %s18, 0
      %p101 = por %p99, %p100
      %s102 = ssub.s32 %s19, %s31
      %s103 = ssub.s32 %s20, %s27
      %s104 = sor.u32 %s102, %s103
      %p105 = scmp.eq.s32.totalorder %s104, 0
      %s107 = sadd.s32 %s106, 1
      %s108 = scalar_select %p105, %s106, %s107
      %p111 = pneg %p105
      %p112 = scmp.eq.s32.totalorder %s12, 1
      %p113 = por %p111, %p112
      %p114 = scmp.ne.s32.totalorder %s106, %s109
      %p115 = scmp.eq.s32.totalorder %s12, 0
      %p116 = por %p114, %p115
      %p117 = scmp.ne.s32.totalorder %s106, %s109
      %p118 = scmp.eq.s32.totalorder %s17, 1
      %p119 = por %p117, %p118
      %p120 = scmp.ne.s32.totalorder %s109, %s110
      %p121 = scmp.eq.s32.totalorder %s17, 0
      %p122 = por %p120, %p121
      %p123 = scmp.ne.s32.totalorder %s109, %s110
      %p124 = scmp.eq.s32.totalorder %s18, 1
      %p125 = por %p123, %p124
      %p127 = scmp.ne.s32.totalorder %s110, %s126
      %p128 = scmp.eq.s32.totalorder %s18, 0
      %p129 = por %p127, %p128
      %p130 = scmp.le.s32.totalorder 1, %s12
      %p131 = scmp.lt.s32.totalorder %s12, 3
      %p132 = pnand %p130, %p131
      %p133 = pneg %p132
      // Predicated region
      $region9: #{tpu_custom_call.1} parent=5 // pred_check
        _
      $region10: #{tpu_custom_call.1} parent=5 // pred_check_branch
        %135 = sbr.rel (%p132) target = $region12
      $region11: #{tpu_custom_call.1} parent=5 // pred_region
        %s136 = ssub.s32 %s12, 1
        // Predicated region
        $region13: #{tpu_custom_call.1} parent=11 // pred_check
          %p137 = pneg %p73
        $region14: #{tpu_custom_call.1} parent=11 // pred_check_branch
          %139 = sbr.rel (%p137) target = $region16
        $region15: #{tpu_custom_call.1} parent=11 // pred_region
          _
        $region16: #{tpu_custom_call.1} parent=11 // pred_fallthru
          _
        // Predicated region
        $region17: #{tpu_custom_call.1} parent=11 // pred_check
          %p140 = pneg %p94
        $region18: #{tpu_custom_call.1} parent=11 // pred_check_branch
          %142 = sbr.rel (%p140) target = $region20
        $region19: #{tpu_custom_call.1} parent=11 // pred_region
          _
        $region20: #{tpu_custom_call.1} parent=11 // pred_fallthru
          _
      $region12: #{tpu_custom_call.1} parent=5 // pred_fallthru
        _
      %p143 = scmp.lt.s32.totalorder %s12, 2
      // Predicated region
      $region21: #{tpu_custom_call.1} parent=5 // pred_check
        %p144 = pneg %p143
      $region22: #{tpu_custom_call.1} parent=5 // pred_check_branch
        %146 = sbr.rel (%p144) target = $region24
      $region23: #{tpu_custom_call.1} parent=5 // pred_region
        // Predicated region
        $region25: #{tpu_custom_call.1} parent=23 // pred_check
          %p147 = pneg %p46
        $region26: #{tpu_custom_call.1} parent=23 // pred_check_branch
          %149 = sbr.rel (%p147) target = $region28
        $region27: #{tpu_custom_call.1} parent=23 // pred_region
          %p150 = scmp.lt.s32.totalorder %s19, 1
          %s151 = scalar_select %p150, %s19, 1
          %p152 = scmp.lt.s32.totalorder %s20, 0
          %s153 = scalar_select %p152, %s20, 0
          %s154 = sadd.s32 %s153, %s151
          %s155 = smul.addr %s154, 8
          %s156 = scalar_lea.vmem %s0, %s155
        $region28: #{tpu_custom_call.1} parent=23 // pred_fallthru
          _
      $region24: #{tpu_custom_call.1} parent=5 // pred_fallthru
        _
      %p157 = scmp.le.s32.totalorder 1, %s12
      %p158 = scmp.lt.s32.totalorder %s12, 3
      %p159 = pnand %p157, %p158
      %p160 = pneg %p159
      // Predicated region
      $region29: #{tpu_custom_call.1} parent=5 // pred_check
        _
      $region30: #{tpu_custom_call.1} parent=5 // pred_check_branch
        %162 = sbr.rel (%p159) target = $region32
      $region31: #{tpu_custom_call.1} parent=5 // pred_region
        %s163 = ssub.s32 %s12, 1
        %p164 = scmp.lt.s32.totalorder %s21, 1
        %s165 = scalar_select %p164, %s21, 1
        %p166 = scmp.lt.s32.totalorder %s22, 0
        %s167 = scalar_select %p166, %s22, 0
        %s168 = sadd.s32 %s167, %s165
        %s169 = smul.addr %s168, 8
        %s170 = scalar_lea.vmem %s0, %s169
        %p171 = pneg %p52
        %p172 = pneg %p49
        %p173 = pneg %p73
        %p174 = pneg %p70
        %p175 = pneg %p94
        %p176 = pneg %p91
        %p177 = pneg %p122
        %p178 = pneg %p119
        %s179 = sand.u32 %s109, 1
        %s180 = scalar_lea.sflag [#allocation3], %s179
        %s181 = sand.u32 %s109, 1
        %s182 = smul.addr %s181, 8
        %s183 = scalar_lea.vmem [#allocation2], %s182
        %p184 = scmp.lt.s32.totalorder %s21, 1
        %s185 = scalar_select %p184, %s21, 1
        %p186 = scmp.lt.s32.totalorder %s22, 0
        %s187 = scalar_select %p186, %s22, 0
        %s188 = sadd.s32 %s187, %s185
        %s189 = smul.addr %s188, 8
        %s190 = scalar_lea.vmem %s0, %s189
        %v191 = vld [vmem:[%s190] sm:$0xff]
        %v192 = vld [vmem:[%s1] sm:$0xff]
        %v193 = vld [vmem:[%s1 + $0x8] sm:$0xff]
        %v194 = vld [vmem:[%s1 + $0x10] sm:$0xff]
        %v195 = vld [vmem:[%s1 + $0x18] sm:$0xff]
        %v196 = vld [vmem:[%s1 + $0x20] sm:$0xff]
        %v197 = vld [vmem:[%s1 + $0x28] sm:$0xff]
        %v198 = vld [vmem:[%s1 + $0x30] sm:$0xff]
        %v199 = vld [vmem:[%s1 + $0x38] sm:$0xff]
        %v200 = vld [vmem:[%s1 + $0x40] sm:$0xff]
        %v201 = vld [vmem:[%s1 + $0x48] sm:$0xff]
        %v202 = vld [vmem:[%s1 + $0x50] sm:$0xff]
        %v203 = vld [vmem:[%s1 + $0x58] sm:$0xff]
        %v204 = vld [vmem:[%s2] sm:$0x1]
        %v206 = vperm.slane %v204, 0
        %vm208 = vcmask 261120
        %v210 = vsel %vm208, %v191, 0
        %v213 = vsel %vm208, %v192, 0
        %v216 = vsel %vm208, %v193, 0
        %v219 = vsel %vm208, %v194, 0
        %v222 = vsel %vm208, %v195, 0
        %v225 = vsel %vm208, %v196, 0
        %v228 = vsel %vm208, %v197, 0
        %v231 = vsel %vm208, %v198, 0
        %v234 = vsel %vm208, %v199, 0
        %v237 = vsel %vm208, %v200, 0
        %v240 = vsel %vm208, %v201, 0
        %v243 = vsel %vm208, %v202, 0
        %v246 = vsel %vm208, %v203, 0
        %248 = vmatpush.xpose.msra.mxu0 0.0
        %249 = vmatpush.xpose.msra.mxu0 0.0
        %250 = vmatpush.xpose.msra.mxu0 0.0
        %251 = vmatpush.xpose.msra.mxu0 0.0
        %252 = vmatpush.xpose.msra.mxu0 %v246
        %253 = vmatpush.xpose.msra.mxu0 %v243
        %254 = vmatpush.xpose.msra.mxu0 %v240
        %255 = vmatpush.xpose.msra.mxu0 %v237
        %256 = vmatpush.xpose.msra.mxu0 %v234
        %257 = vmatpush.xpose.msra.mxu0 %v231
        %258 = vmatpush.xpose.msra.mxu0 %v228
        %259 = vmatpush.xpose.msra.mxu0 %v225
        %260 = vmatpush.xpose.msra.mxu0 %v222
        %261 = vmatpush.xpose.msra.mxu0 %v219
        %262 = vmatpush.xpose.msra.mxu0 %v216
        %263 = vmatpush.xpose.msra.mxu0 %v213
        %264 = vmatmul.f32.gmra.mxu0 %v210
        %v265 = vpop.f32.mrf.mxu0
        %v266 = vadd.f32 %v206, %v265
        %267 = vdwg.mxu0
        %vm268 = vcmask 785408
        %269 = vst.msk [vmem:[%s183] sm:$0xff] %vm268, %v266
        %s270 = sand.u32 %s109, 1
        %s271 = scalar_lea.sflag [#allocation3], %s270
        %s272 = sand.u32 %s109, 1
        %s273 = smul.addr %s272, 8
        %s274 = scalar_lea.vmem [#allocation2], %s273
        // Predicated region
        $region33: #{tpu_custom_call.1} parent=31 // pred_check
          %p275 = pneg %p119
        $region34: #{tpu_custom_call.1} parent=31 // pred_check_branch
          %277 = sbr.rel (%p275) target = $region36
        $region35: #{tpu_custom_call.1} parent=31 // pred_region
          %279 = vsyncadd %s271, 0
          %s280 = sadd.s32 %s22, %s21
          %s281 = smul.addr %s280, 8
          %s282 = scalar_lea.hbm %s3, %s281
          %s284 = sshll.u32 %s274, 4
          %s285 = int_to_ptr.vmem [resolvable:$true] %s284
          %s286 = sshll.u32 %s282, 4
          %s287 = int_to_ptr.hbm [resolvable:$true] %s286
          %289 = dma.vmem_to_hbm [thread:$0]  %s285, 128, %s287, %s271
        $region36: #{tpu_custom_call.1} parent=31 // pred_fallthru
          _
      $region32: #{tpu_custom_call.1} parent=5 // pred_fallthru
        _
      %p290 = scmp.le.s32.totalorder 2, %s12
      // Predicated region
      $region37: #{tpu_custom_call.1} parent=5 // pred_check
        %p291 = pneg %p290
      $region38: #{tpu_custom_call.1} parent=5 // pred_check_branch
        %293 = sbr.rel (%p291) target = $region40
      $region39: #{tpu_custom_call.1} parent=5 // pred_region
        %s294 = ssub.s32 %s12, 2
        // Predicated region
        $region41: #{tpu_custom_call.1} parent=39 // pred_check
          %p295 = pneg %p125
        $region42: #{tpu_custom_call.1} parent=39 // pred_check_branch
          %297 = sbr.rel (%p295) target = $region44
        $region43: #{tpu_custom_call.1} parent=39 // pred_region
          %s298 = sand.u32 %s110, 1
          %s299 = scalar_lea.sflag [#allocation3], %s298
          %s300 = sand.u32 %s110, 1
          %s301 = smul.addr %s300, 8
          %s302 = scalar_lea.vmem [#allocation2], %s301
          %304 = dma.done %s299, 128
        $region44: #{tpu_custom_call.1} parent=39 // pred_fallthru
          _
      $region40: #{tpu_custom_call.1} parent=5 // pred_fallthru
        _
    $region6: #{tpu_custom_call.1} parent=1 // loop_footer
      %s16 = sadd.s32 1, %s12
    $region7: #{tpu_custom_call.1} parent=1 // loop_footer_branch
      %11 = sbr.rel target = $region3
    $region8: #{tpu_custom_call.1} parent=1 // loop_exit
      _
    %305 = vsyncpa [#allocation3], 1
    %s306 = scalar_lea.sflag [#allocation3], 1
    %307 = vsyncpa %s306, 1

// kernel: tpu_custom_call.1
$region0: #{tpu_custom_call.1}
  #allocation0 [shape = 'u32[]', space=smem, size = 0x4, offset = 0x4, fixed_abs, tag = 'smem constant byte address 0x4 - core index']
  #allocation1 [shape = 'u32[72,128]{1,0:T(1,128)}', space=vmem, size = 0x9000, scoped, tag = 'internal scratch']
  %s0 = inlined_call_operand.vmem [shape: f32[2,8,32], index: 0, kind: input, shape index: {}]
  %s1 = inlined_call_operand.vmem [shape: f32[96,32], index: 1, kind: input, shape index: {}]
  %s2 = inlined_call_operand.vmem [shape: f32[1,96], index: 2, kind: input, shape index: {}]
  %s3 = inlined_call_operand.hbm [shape: f32[2,8,96], index: 3, kind: output, shape index: {}]
  %s4 = sld [smem:[#allocation0]]
  $region45: #{tpu_custom_call.1} parent=0
    _
  %s6 = ssub.s32 1, %s4
  %s7 = scalar_select 0, %s6, %s4
  $region1: #{tpu_custom_call.1} parent=0
    #allocation2 [shape = 'u8[8192]{0}', space=vmem, size = 0x2000, scoped, tag = 'output window, operand 0']
    #allocation3 [shape = 's32[2]{0}', space=sflag, size = 0x8, scoped, tag = 'scoped memory for tpu_custom_call.1']
    %8 = vsyncpa [#allocation3], 0
    %s9 = scalar_lea.sflag [#allocation3], 1
    %10 = vsyncpa %s9, 0
    loop: start=0, step=1, limit=4
    $region2: #{tpu_custom_call.1} parent=1 // loop_pre_header
      _
    $region3: #{tpu_custom_call.1} parent=1 // loop_header
      %s12 = sphi 0, %s16
      %p13 = scmp.ge.s32.totalorder %s12, 4
      %s19 = sphi 0, %s31
      %s20 = sphi 0, %s27
      %s21 = sphi 0, %s19
      %s22 = sphi 0, %s20
      %s23 = sphi 0, %s21
      %s24 = sphi 0, %s22
      %s36 = sphi 0, %s38
      %s39 = sphi 0, %s36
      %s40 = sphi 0, %s39
      %s56 = sphi 0, %s40
      %s60 = sphi 0, %s60
      %s62 = sphi 0, %s60
      %s63 = sphi 0, %s62
      %s77 = sphi 0, %s63
      %s81 = sphi 0, %s81
      %s83 = sphi 0, %s81
      %s84 = sphi 0, %s83
      %s98 = sphi 0, %s84
      %s106 = sphi 0, %s108
      %s109 = sphi 0, %s106
      %s110 = sphi 0, %s109
      %s126 = sphi 0, %s110
    $region4: #{tpu_custom_call.1} parent=1 // loop_header_branch
      %15 = sbr.rel (%p13) target = $region8
    $region5: #{tpu_custom_call.1} parent=1 // loop_body
      %s17 = ssub.s32 %s12, 1
      %s18 = ssub.s32 %s12, 2
      %s25 = sadd.s32 1, %s20
      %p26 = scmp.ge.s32.totalorder %s25, 1
      %s27 = scalar_select %p26, 0, %s25
      %s28 = sadd.s32 1, %s19
      %s29 = scalar_select %p26, %s28, %s19
      %p30 = scmp.ge.s32.totalorder %s29, 2
      %s31 = scalar_select %p30, 0, %s29
      %s32 = ssub.s32 %s19, %s31
      %s33 = ssub.s32 %s20, %s27
      %s34 = sor.u32 %s32, %s33
      %p35 = scmp.eq.s32.totalorder %s34, 0
      %s37 = sadd.s32 %s36, 1
      %s38 = scalar_select %p35, %s36, %s37
      %p41 = pneg %p35
      %p42 = scmp.eq.s32.totalorder %s12, 1
      %p43 = por %p41, %p42
      %p44 = scmp.ne.s32.totalorder %s36, %s39
      %p45 = scmp.eq.s32.totalorder %s12, 0
      %p46 = por %p44, %p45
      %p47 = scmp.ne.s32.totalorder %s36, %s39
      %p48 = scmp.eq.s32.totalorder %s17, 1
      %p49 = por %p47, %p48
      %p50 = scmp.ne.s32.totalorder %s39, %s40
      %p51 = scmp.eq.s32.totalorder %s17, 0
      %p52 = por %p50, %p51
      %p53 = scmp.ne.s32.totalorder %s39, %s40
      %p54 = scmp.eq.s32.totalorder %s18, 1
      %p55 = por %p53, %p54
      %p57 = scmp.ne.s32.totalorder %s40, %s56
      %p58 = scmp.eq.s32.totalorder %s18, 0
      %p59 = por %p57, %p58
      %s61 = sadd.s32 %s60, 1
      %p64 = scmp.eq.s32.totalorder %s12, 1
      %p65 = scmp.ne.s32.totalorder %s60, %s62
      %p66 = scmp.eq.s32.totalorder %s12, 0
      %p67 = por %p65, %p66
      %p68 = scmp.ne.s32.totalorder %s60, %s62
      %p69 = scmp.eq.s32.totalorder %s17, 1
      %p70 = por %p68, %p69
      %p71 = scmp.ne.s32.totalorder %s62, %s63
      %p72 = scmp.eq.s32.totalorder %s17, 0
      %p73 = por %p71, %p72
      %p74 = scmp.ne.s32.totalorder %s62, %s63
      %p75 = scmp.eq.s32.totalorder %s18, 1
      %p76 = por %p74, %p75
      %p78 = scmp.ne.s32.totalorder %s63, %s77
      %p79 = scmp.eq.s32.totalorder %s18, 0
      %p80 = por %p78, %p79
      %s82 = sadd.s32 %s81, 1
      %p85 = scmp.eq.s32.totalorder %s12, 1
      %p86 = scmp.ne.s32.totalorder %s81, %s83
      %p87 = scmp.eq.s32.totalorder %s12, 0
      %p88 = por %p86, %p87
      %p89 = scmp.ne.s32.totalorder %s81, %s83
      %p90 = scmp.eq.s32.totalorder %s17, 1
      %p91 = por %p89, %p90
      %p92 = scmp.ne.s32.totalorder %s83, %s84
      %p93 = scmp.eq.s32.totalorder %s17, 0
      %p94 = por %p92, %p93
      %p95 = scmp.ne.s32.totalorder %s83, %s84
      %p96 = scmp.eq.s32.totalorder %s18, 1
      %p97 = por %p95, %p96
      %p99 = scmp.ne.s32.totalorder %s84, %s98
      %p100 = scmp.eq.s32.totalorder %s18, 0
      %p101 = por %p99, %p100
      %s102 = ssub.s32 %s19, %s31
      %s103 = ssub.s32 %s20, %s27
      %s104 = sor.u32 %s102, %s103
      %p105 = scmp.eq.s32.totalorder %s104, 0
      %s107 = sadd.s32 %s106, 1
      %s108 = scalar_select %p105, %s106, %s107
      %p111 = pneg %p105
      %p112 = scmp.eq.s32.totalorder %s12, 1
      %p113 = por %p111, %p112
      %p114 = scmp.ne.s32.totalorder %s106, %s109
      %p115 = scmp.eq.s32.totalorder %s12, 0
      %p116 = por %p114, %p115
      %p117 = scmp.ne.s32.totalorder %s106, %s109
      %p118 = scmp.eq.s32.totalorder %s17, 1
      %p119 = por %p117, %p118
      %p120 = scmp.ne.s32.totalorder %s109, %s110
      %p121 = scmp.eq.s32.totalorder %s17, 0
      %p122 = por %p120, %p121
      %p123 = scmp.ne.s32.totalorder %s109, %s110
      %p124 = scmp.eq.s32.totalorder %s18, 1
      %p125 = por %p123, %p124
      %p127 = scmp.ne.s32.totalorder %s110, %s126
      %p128 = scmp.eq.s32.totalorder %s18, 0
      %p129 = por %p127, %p128
      %p130 = scmp.le.s32.totalorder 1, %s12
      %p131 = scmp.lt.s32.totalorder %s12, 3
      %p132 = pnand %p130, %p131
      %p133 = pneg %p132
      // Predicated region
      $region9: #{tpu_custom_call.1} parent=5 // pred_check
        _
      $region10: #{tpu_custom_call.1} parent=5 // pred_check_branch
        %135 = sbr.rel (%p132) target = $region12
      $region11: #{tpu_custom_call.1} parent=5 // pred_region
        %s136 = ssub.s32 %s12, 1
        // Predicated region
        $region13: #{tpu_custom_call.1} parent=11 // pred_check
          %p137 = pneg %p73
        $region14: #{tpu_custom_call.1} parent=11 // pred_check_branch
          %139 = sbr.rel (%p137) target = $region16
        $region15: #{tpu_custom_call.1} parent=11 // pred_region
          _
        $region16: #{tpu_custom_call.1} parent=11 // pred_fallthru
          _
        // Predicated region
        $region17: #{tpu_custom_call.1} parent=11 // pred_check
          %p140 = pneg %p94
        $region18: #{tpu_custom_call.1} parent=11 // pred_check_branch
          %142 = sbr.rel (%p140) target = $region20
        $region19: #{tpu_custom_call.1} parent=11 // pred_region
          _
        $region20: #{tpu_custom_call.1} parent=11 // pred_fallthru
          _
      $region12: #{tpu_custom_call.1} parent=5 // pred_fallthru
        _
      %p143 = scmp.lt.s32.totalorder %s12, 2
      // Predicated region
      $region21: #{tpu_custom_call.1} parent=5 // pred_check
        %p144 = pneg %p143
      $region22: #{tpu_custom_call.1} parent=5 // pred_check_branch
        %146 = sbr.rel (%p144) target = $region24
      $region23: #{tpu_custom_call.1} parent=5 // pred_region
        // Predicated region
        $region25: #{tpu_custom_call.1} parent=23 // pred_check
          %p147 = pneg %p46
        $region26: #{tpu_custom_call.1} parent=23 // pred_check_branch
          %149 = sbr.rel (%p147) target = $region28
        $region27: #{tpu_custom_call.1} parent=23 // pred_region
          %p150 = scmp.lt.s32.totalorder %s19, 1
          %s151 = scalar_select %p150, %s19, 1
          %p152 = scmp.lt.s32.totalorder %s20, 0
          %s153 = scalar_select %p152, %s20, 0
          %s154 = sadd.s32 %s153, %s151
          %s155 = smul.addr %s154, 8
          %s156 = scalar_lea.vmem %s0, %s155
        $region28: #{tpu_custom_call.1} parent=23 // pred_fallthru
          _
      $region24: #{tpu_custom_call.1} parent=5 // pred_fallthru
        _
      %p157 = scmp.le.s32.totalorder 1, %s12
      %p158 = scmp.lt.s32.totalorder %s12, 3
      %p159 = pnand %p157, %p158
      %p160 = pneg %p159
      // Predicated region
      $region29: #{tpu_custom_call.1} parent=5 // pred_check
        _
      $region30: #{tpu_custom_call.1} parent=5 // pred_check_branch
        %162 = sbr.rel (%p159) target = $region32
      $region31: #{tpu_custom_call.1} parent=5 // pred_region
        %s163 = ssub.s32 %s12, 1
        %p164 = scmp.lt.s32.totalorder %s21, 1
        %s165 = scalar_select %p164, %s21, 1
        %p166 = scmp.lt.s32.totalorder %s22, 0
        %s167 = scalar_select %p166, %s22, 0
        %s168 = sadd.s32 %s167, %s165
        %s169 = smul.addr %s168, 8
        %s170 = scalar_lea.vmem %s0, %s169
        %p171 = pneg %p52
        %p172 = pneg %p49
        %p173 = pneg %p73
        %p174 = pneg %p70
        %p175 = pneg %p94
        %p176 = pneg %p91
        %p177 = pneg %p122
        %p178 = pneg %p119
        %s179 = sand.u32 %s109, 1
        %s180 = scalar_lea.sflag [#allocation3], %s179
        %s181 = sand.u32 %s109, 1
        %s182 = smul.addr %s181, 8
        %s183 = scalar_lea.vmem [#allocation2], %s182
        %p184 = scmp.lt.s32.totalorder %s21, 1
        %s185 = scalar_select %p184, %s21, 1
        %p186 = scmp.lt.s32.totalorder %s22, 0
        %s187 = scalar_select %p186, %s22, 0
        %s188 = sadd.s32 %s187, %s185
        %s189 = smul.addr %s188, 8
        %s190 = scalar_lea.vmem %s0, %s189
        %v191 = vld [vmem:[%s190] sm:$0xff]
        %v192 = vld [vmem:[%s1] sm:$0xff]
        %v193 = vld [vmem:[%s1 + $0x8] sm:$0xff]
        %v194 = vld [vmem:[%s1 + $0x10] sm:$0xff]
        %v195 = vld [vmem:[%s1 + $0x18] sm:$0xff]
        %v196 = vld [vmem:[%s1 + $0x20] sm:$0xff]
        %v197 = vld [vmem:[%s1 + $0x28] sm:$0xff]
        %v198 = vld [vmem:[%s1 + $0x30] sm:$0xff]
        %v199 = vld [vmem:[%s1 + $0x38] sm:$0xff]
        %v200 = vld [vmem:[%s1 + $0x40] sm:$0xff]
        %v201 = vld [vmem:[%s1 + $0x48] sm:$0xff]
        %v202 = vld [vmem:[%s1 + $0x50] sm:$0xff]
        %v203 = vld [vmem:[%s1 + $0x58] sm:$0xff]
        %v204 = vld [vmem:[%s2] sm:$0x1]
        %v206 = vperm.slane %v204, 0
        %vm208 = vcmask 261120
        %v210 = vsel %vm208, %v191, 0
        %v213 = vsel %vm208, %v192, 0
        %v216 = vsel %vm208, %v193, 0
        %v219 = vsel %vm208, %v194, 0
        %v222 = vsel %vm208, %v195, 0
        %v225 = vsel %vm208, %v196, 0
        %v228 = vsel %vm208, %v197, 0
        %v231 = vsel %vm208, %v198, 0
        %v234 = vsel %vm208, %v199, 0
        %v237 = vsel %vm208, %v200, 0
        %v240 = vsel %vm208, %v201, 0
        %v243 = vsel %vm208, %v202, 0
        %v246 = vsel %vm208, %v203, 0
        %248 = vmatpush.xpose.msra.mxu0 0.0
        %249 = vmatpush.xpose.msra.mxu0 0.0
        %250 = vmatpush.xpose.msra.mxu0 0.0
        %251 = vmatpush.xpose.msra.mxu0 0.0
        %252 = vmatpush.xpose.msra.mxu0 %v246
        %253 = vmatpush.xpose.msra.mxu0 %v243
        %254 = vmatpush.xpose.msra.mxu0 %v240
        %255 = vmatpush.xpose.msra.mxu0 %v237
        %256 = vmatpush.xpose.msra.mxu0 %v234
        %257 = vmatpush.xpose.msra.mxu0 %v231
        %258 = vmatpush.xpose.msra.mxu0 %v228
        %259 = vmatpush.xpose.msra.mxu0 %v225
        %260 = vmatpush.xpose.msra.mxu0 %v222
        %261 = vmatpush.xpose.msra.mxu0 %v219
        %262 = vmatpush.xpose.msra.mxu0 %v216
        %263 = vmatpush.xpose.msra.mxu0 %v213
        %264 = vmatmul.f32.gmra.mxu0 %v210
        %v265 = vpop.f32.mrf.mxu0
        %v266 = vadd.f32 %v206, %v265
        %267 = vdwg.mxu0
        %vm268 = vcmask 785408
        %269 = vst.msk [vmem:[%s183] sm:$0xff] %vm268, %v266
        %s270 = sand.u32 %s109, 1
        %s271 = scalar_lea.sflag [#allocation3], %s270
        %s272 = sand.u32 %s109, 1
        %s273 = smul.addr %s272, 8
        %s274 = scalar_lea.vmem [#allocation2], %s273
        // Predicated region
        $region33: #{tpu_custom_call.1} parent=31 // pred_check
          %p275 = pneg %p119
        $region34: #{tpu_custom_call.1} parent=31 // pred_check_branch
          %277 = sbr.rel (%p275) target = $region36
        $region35: #{tpu_custom_call.1} parent=31 // pred_region
          %279 = vsyncadd %s271, 0
          %s280 = sadd.s32 %s22, %s21
          %s281 = smul.addr %s280, 8
          %s282 = scalar_lea.hbm %s3, %s281
          %s284 = sshll.u32 %s274, 4
          %s285 = int_to_ptr.vmem [resolvable:$true] %s284
          %s286 = sshll.u32 %s282, 4
          %s287 = int_to_ptr.hbm [resolvable:$true] %s286
          %289 = dma.vmem_to_hbm [thread:$0]  %s285, 128, %s287, %s271
        $region36: #{tpu_custom_call.1} parent=31 // pred_fallthru
          _
      $region32: #{tpu_custom_call.1} parent=5 // pred_fallthru
        _
      %p290 = scmp.le.s32.totalorder 2, %s12
      // Predicated region
      $region37: #{tpu_custom_call.1} parent=5 // pred_check
        %p291 = pneg %p290
      $region38: #{tpu_custom_call.1} parent=5 // pred_check_branch
        %293 = sbr.rel (%p291) target = $region40
      $region39: #{tpu_custom_call.1} parent=5 // pred_region
        %s294 = ssub.s32 %s12, 2
        // Predicated region
        $region41: #{tpu_custom_call.1} parent=39 // pred_check
          %p295 = pneg %p125
        $region42: #{tpu_custom_call.1} parent=39 // pred_check_branch
          %297 = sbr.rel (%p295) target = $region44
        $region43: #{tpu_custom_call.1} parent=39 // pred_region
          %s298 = sand.u32 %s110, 1
          %s299 = scalar_lea.sflag [#allocation3], %s298
          %s300 = sand.u32 %s110, 1
          %s301 = smul.addr %s300, 8
          %s302 = scalar_lea.vmem [#allocation2], %s301
          %304 = dma.done %s299, 128
        $region44: #{tpu_custom_call.1} parent=39 // pred_fallthru
          _
      $region40: #{tpu_custom_call.1} parent=5 // pred_fallthru
        _
    $region6: #{tpu_custom_call.1} parent=1 // loop_footer
      %s16 = sadd.s32 1, %s12
    $region7: #{tpu_custom_call.1} parent=1 // loop_footer_branch
      %11 = sbr.rel target = $region3
    $region8: #{tpu_custom_call.1} parent=1 // loop_exit
      _
    %305 = vsyncpa [#allocation3], 1
    %s306 = scalar_lea.sflag [#allocation3], 1
    %307 = vsyncpa %s306, 1

</llo_original>
